<compile_context>
chip_gen: v6e
topology: v6e:2x2x1
jax: 0.10.0
libtpu: 0.0.40
codegen_flags: <defaults>
</compile_context>

<pallas_src>
import functools
import math

import jax
import jax.numpy as jnp
from jax.experimental import pallas as pl
from jax.experimental.pallas import tpu as pltpu


def _round_up(x, m):
    return (x + m - 1) // m * m


# ----------------------------------------------------------------------------
# Pallas kernel: fused embedding-fold + hidden Linear/ReLU stack + output layer
# + 2-class log-softmax, for one (tb, n_feat) batch tile.
# ----------------------------------------------------------------------------
def _fused_mlp_kernel(x_ref, comb_ref, wnum_ref, b1_ref, *rest,
                      n_cat, cat_offsets, compute_dtype):
    # rest = (W2, b2, ..., Wn, bn, Wout, bout, out_ref)
    out_ref = rest[-1]
    params = rest[:-1]
    n_extra_hidden = (len(params) - 2) // 2

    x = x_ref[...]                                   # (tb, n_cat + n_num) f32
    tb = x.shape[0]
    total_cats = comb_ref.shape[0]

    # ---- layer 1, categorical part: multi-one-hot @ folded (tbl @ W1) table ----
    lane = jax.lax.broadcasted_iota(jnp.int32, (tb, total_cats), 1)
    onehot = jnp.zeros((tb, total_cats), jnp.float32)
    for f in range(n_cat):
        idx = x[:, f:f + 1].astype(jnp.int32) + cat_offsets[f]    # (tb, 1)
        onehot = onehot + (lane == idx).astype(jnp.float32)

    x_num = x[:, n_cat:].astype(compute_dtype)                     # (tb, n_num)
    h = (jnp.dot(onehot.astype(compute_dtype), comb_ref[...],
                 preferred_element_type=jnp.float32)
         + jnp.dot(x_num, wnum_ref[...], preferred_element_type=jnp.float32)
         + b1_ref[...])
    h = jnp.maximum(h, 0.0)

    # ---- remaining hidden layers (Linear + ReLU) ----
    for l in range(n_extra_hidden):
        w = params[2 * l][...]
        b = params[2 * l + 1][...]
        h = jnp.dot(h.astype(compute_dtype), w,
                    preferred_element_type=jnp.float32) + b
        h = jnp.maximum(h, 0.0)

    # ---- output layer + 2-class LogSoftmax in closed form ----
    w_out = params[-2][...]
    b_out = params[-1][...]
    logits = jnp.dot(h.astype(compute_dtype), w_out,
                     preferred_element_type=jnp.float32) + b_out    # (tb, 2)
    d = logits[:, 1:2] - logits[:, 0:1]
    t = jnp.log(1.0 + jnp.exp(-jnp.abs(d)))          # shared softplus tail
    logp0 = -(jnp.maximum(d, 0.0) + t)               # = -softplus(d)  = log p(class 0)
    logp1 = -(jnp.maximum(-d, 0.0) + t)              # = -softplus(-d) = log p(class 1)
    out_ref[...] = jnp.concatenate([logp0, logp1], axis=-1)


def _predictor_forward(inputs, kernel_params, *, n_cat, cat_offsets,
                       compute_dtype, block_rows):
    comb_cat, b1 = kernel_params[0], kernel_params[2]
    out_dim = kernel_params[-1].shape[-1]
    hid = b1.shape[-1]
    total_cats = comb_cat.shape[0]

    B, n_feat = inputs.shape
    tb = min(block_rows, _round_up(max(B, 1), 8))
    Bp = _round_up(B, tb)
    x = inputs if Bp == B else jnp.pad(inputs, ((0, Bp - B), (0, 0)))

    in_specs = [pl.BlockSpec((tb, n_feat), lambda i: (i, 0))]
    # Weights/biases: full-array blocks with constant index_map -> VMEM-resident.
    in_specs += [pl.BlockSpec(p.shape, lambda i: (0, 0)) for p in kernel_params]
    out_specs = pl.BlockSpec((tb, out_dim), lambda i: (i, 0))

    # VMEM budget: double-buffered x/out tiles + resident params + intermediates.
    param_bytes = sum(p.size * p.dtype.itemsize for p in kernel_params)
    need = (2 * tb * n_feat * 4 + 2 * tb * out_dim * 4 + 2 * param_bytes
            + tb * (2 * hid + total_cats + 8) * 4)
    vmem_limit = int(min(60 * 2 ** 20, max(2 * need, 8 * 2 ** 20)))

    kernel = functools.partial(_fused_mlp_kernel, n_cat=n_cat,
                               cat_offsets=cat_offsets,
                               compute_dtype=compute_dtype)
    out = pl.pallas_call(
        kernel,
        grid=(Bp // tb,),
        in_specs=in_specs,
        out_specs=out_specs,
        out_shape=jax.ShapeDtypeStruct((Bp, out_dim), jnp.float32),
        compiler_params=pltpu.CompilerParams(
            dimension_semantics=("parallel",),
            vmem_limit_bytes=vmem_limit),
    )(x, *kernel_params)
    return out[:B]


# ----------------------------------------------------------------------------
# Predictor: parameter construction + jitted forward.
# ----------------------------------------------------------------------------
class PredictorPallas:
    def __init__(self, *, cat_feats, num_feats, categories, hidden_size,
                 num_layers, activation, key, compute_dtype=jnp.float32,
                 block_rows=512):
        assert activation == "ReLU"  # kernel implements ReLU
        self.cat_feats = cat_feats
        self.num_feats = num_feats
        self.categories = categories
        self.hid_dim = hidden_size
        self.n_layers = num_layers
        self.out_dim = 2
        self.compute_dtype = compute_dtype
        self.block_rows = block_rows

        keys = jax.random.split(key, len(cat_feats) + num_layers + 1)
        ki = 0
        self.emb_tables = []
        self.emb_dims = []
        self.in_dim = 0
        for c in cat_feats:
            n_rows = len(categories[c]) + 1
            d = int(math.ceil(math.log(n_rows) / math.log(2.0)))
            tbl = jax.random.normal(keys[ki], (n_rows, d), jnp.float32)
            ki += 1
            self.emb_tables.append(tbl)
            self.emb_dims.append(d)
            self.in_dim += d
        self.in_dim += len(num_feats)

        # Hidden Linear layers (W stored as (in, out): y = x @ W + b)
        self.hidden_params = []
        tmp = self.in_dim
        for _ in range(num_layers):
            kw, kb = jax.random.split(keys[ki]); ki += 1
            bound = 1.0 / math.sqrt(tmp)
            w = jax.random.uniform(kw, (tmp, hidden_size), jnp.float32, -bound, bound)
            b = jax.random.uniform(kb, (hidden_size,), jnp.float32, -bound, bound)
            self.hidden_params.append((w, b))
            tmp = hidden_size

        kw, kb = jax.random.split(keys[ki])
        bound = 1.0 / math.sqrt(hidden_size)
        self.out_w = jax.random.uniform(kw, (hidden_size, self.out_dim),
                                        jnp.float32, -bound, bound)
        self.out_b = jax.random.uniform(kb, (self.out_dim,),
                                        jnp.float32, -bound, bound)

        # ---- fold embeddings into layer-1 weights (done once, at init) ------
        w1, b1 = self.hidden_params[0]
        comb_parts, offsets = [], []
        off = 0
        row = 0
        for tbl, d in zip(self.emb_tables, self.emb_dims):
            comb_parts.append(tbl @ w1[row:row + d, :])    # (n_rows_f, hid)
            offsets.append(off)
            off += tbl.shape[0]
            row += d
        comb_cat = jnp.concatenate(comb_parts, axis=0)      # (total_cats, hid)
        pad_rows = _round_up(comb_cat.shape[0], 8) - comb_cat.shape[0]
        if pad_rows:
            comb_cat = jnp.pad(comb_cat, ((0, pad_rows), (0, 0)))
        w1_num = w1[row:, :]                                # (n_num, hid)

        cd = compute_dtype
        kp = [comb_cat.astype(cd), w1_num.astype(cd),
              b1.reshape(1, -1).astype(jnp.float32)]
        for w, b in self.hidden_params[1:]:
            kp.append(w.astype(cd))
            kp.append(b.reshape(1, -1).astype(jnp.float32))
        kp.append(self.out_w.astype(cd))
        kp.append(self.out_b.reshape(1, -1).astype(jnp.float32))
        self.kernel_params = tuple(kp)
        self._cat_offsets = tuple(int(o) for o in offsets)

        self._forward = jax.jit(functools.partial(
            _predictor_forward,
            n_cat=len(cat_feats),
            cat_offsets=self._cat_offsets,
            compute_dtype=cd,
            block_rows=block_rows))

    def __call__(self, inputs):
        # inputs: (B, n_cat + n_num) float32; first n_cat columns are indices.
        return self._forward(inputs, self.kernel_params)

    # pure-JAX f32 reference (mirrors the PyTorch module) for sanity checking
    def reference(self, inputs):
        n_num = len(self.num_feats)
        feats = []
        for i, tbl in enumerate(self.emb_tables):
            idx = inputs[:, i].astype(jnp.int32)
            feats.append(jnp.take(tbl, idx, axis=0))
        feats.append(inputs[:, -n_num:])
        h = jnp.concatenate(feats, axis=1)
        for w, b in self.hidden_params:
            h = jnp.maximum(h @ w + b, 0.0)
        logits = h @ self.out_w + self.out_b
        return jax.nn.log_softmax(logits, axis=1)


if __name__ == "__main__":
    key = jax.random.PRNGKey(0)
    k_model, k_cat, k_num = jax.random.split(key, 3)

    cat_feats = ["cat0", "cat1", "cat2"]
    num_feats = [f"num{i}" for i in range(7)]
    categories = {
        "cat0": list(range(6)),    # emb_dim = ceil(log2(7))  = 3
        "cat1": list(range(10)),   # emb_dim = ceil(log2(11)) = 4
        "cat2": list(range(3)),    # emb_dim = ceil(log2(4))  = 2
    }

    def make_inputs(batch):
        cat_cols = []
        for i, c in enumerate(cat_feats):
            kk = jax.random.fold_in(k_cat, i)
            cat_cols.append(
                jax.random.randint(kk, (batch, 1), 0, len(categories[c]) + 1)
                .astype(jnp.float32))
        kk = jax.random.fold_in(k_num, batch)
        num_cols = jax.random.normal(kk, (batch, len(num_feats)), jnp.float32)
        return jnp.concatenate(cat_cols + [num_cols], axis=1)   # (batch, 10)

    # f32 model: tight check against the pure-JAX reference.
    model = PredictorPallas(
        cat_feats=cat_feats, num_feats=num_feats, categories=categories,
        hidden_size=32, num_layers=2, activation="ReLU", key=k_model,
        compute_dtype=jnp.float32, block_rows=512)

    x_small = make_inputs(8)
    out_small = jax.block_until_ready(model(x_small))
    ref_small = model.reference(x_small)
    assert out_small.shape == (8, 2)
    assert jnp.allclose(out_small, ref_small, atol=1e-4, rtol=1e-4)
    assert jnp.allclose(jnp.sum(jnp.exp(out_small), axis=1), 1.0, atol=1e-5)

    # Larger, non-tile-multiple batch: exercises the batch grid + padding path.
    x_big = make_inputs(1500)            # tb=512 -> grid=(3,), 36 padded rows
    out_big = jax.block_until_ready(model(x_big))
    ref_big = model.reference(x_big)
    assert out_big.shape == (1500, 2)
    assert jnp.allclose(out_big, ref_big, atol=1e-4, rtol=1e-4)

    # bf16 matmul operands (v6e/v7x fast path), f32 accumulation/elementwise.
    model_bf16 = PredictorPallas(
        cat_feats=cat_feats, num_feats=num_feats, categories=categories,
        hidden_size=32, num_layers=2, activation="ReLU", key=k_model,
        compute_dtype=jnp.bfloat16, block_rows=512)
    out_bf16 = jax.block_until_ready(model_bf16(x_big))
    assert out_bf16.shape == (1500, 2)
    assert jnp.allclose(out_bf16, ref_big, atol=5e-2, rtol=5e-2)

    print("KERNEL_OK")
</pallas_src>

<mosaic_0001>
module attributes {stable_mosaic.version = 11 : i64} {
  func.func @_fused_mlp_kernel(%arg0: i32, %arg1: memref<8x10xf32, #tpu.memory_space<vmem>>, %arg2: memref<24x32xf32, #tpu.memory_space<vmem>>, %arg3: memref<7x32xf32, #tpu.memory_space<vmem>>, %arg4: memref<1x32xf32, #tpu.memory_space<vmem>>, %arg5: memref<32x32xf32, #tpu.memory_space<vmem>>, %arg6: memref<1x32xf32, #tpu.memory_space<vmem>>, %arg7: memref<32x2xf32, #tpu.memory_space<vmem>>, %arg8: memref<1x2xf32, #tpu.memory_space<vmem>>, %arg9: memref<8x2xf32, #tpu.memory_space<vmem>>) attributes {dimension_semantics = [#tpu.dimension_semantics<parallel>], iteration_bounds = array<i64: 1>, scalar_prefetch = 0 : i64, scratch_operands = 0 : i64, tpu.core_type = #tpu.core_type<tc>, window_params = [{transform_indices = @transform_0, window_bounds = array<i64: 8, 10>}, {pipeline_mode = #tpu.pipeline_mode<synchronous>, transform_indices = @transform_1, window_bounds = array<i64: 24, 32>}, {pipeline_mode = #tpu.pipeline_mode<synchronous>, transform_indices = @transform_2, window_bounds = array<i64: 7, 32>}, {pipeline_mode = #tpu.pipeline_mode<synchronous>, transform_indices = @transform_3, window_bounds = array<i64: 1, 32>}, {pipeline_mode = #tpu.pipeline_mode<synchronous>, transform_indices = @transform_4, window_bounds = array<i64: 32, 32>}, {pipeline_mode = #tpu.pipeline_mode<synchronous>, transform_indices = @transform_5, window_bounds = array<i64: 1, 32>}, {pipeline_mode = #tpu.pipeline_mode<synchronous>, transform_indices = @transform_6, window_bounds = array<i64: 32, 2>}, {pipeline_mode = #tpu.pipeline_mode<synchronous>, transform_indices = @transform_7, window_bounds = array<i64: 1, 2>}, {transform_indices = @transform_8, window_bounds = array<i64: 8, 2>}]} {
    %c0 = arith.constant 0 : index
    %c0_0 = arith.constant 0 : index
    %0 = vector.load %arg1[%c0, %c0_0] : memref<8x10xf32, #tpu.memory_space<vmem>>, vector<8x10xf32>
    %1 = tpu.iota {dimensions = array<i32: 1>} : vector<8x24xi32>
    %cst = arith.constant 0.000000e+00 : f32
    %2 = vector.broadcast %cst : f32 to vector<8x24xf32>
    %3 = vector.extract_strided_slice %0 {offsets = [0, 0], sizes = [8, 1], strides = [1, 1]} : vector<8x10xf32> to vector<8x1xf32>
    %4 = arith.fptosi %3 : vector<8x1xf32> to vector<8x1xi32>
    %c0_i32 = arith.constant 0 : i32
    %5 = vector.broadcast %c0_i32 : i32 to vector<8x1xi32>
    %6 = arith.addi %4, %5 : vector<8x1xi32>
    %7 = vector.broadcast %6 : vector<8x1xi32> to vector<8x24xi32>
    %8 = arith.cmpi eq, %1, %7 : vector<8x24xi32>
    %9 = arith.extui %8 : vector<8x24xi1> to vector<8x24xi32>
    %10 = arith.sitofp %9 : vector<8x24xi32> to vector<8x24xf32>
    %11 = arith.addf %2, %10 : vector<8x24xf32>
    %12 = vector.extract_strided_slice %0 {offsets = [0, 1], sizes = [8, 1], strides = [1, 1]} : vector<8x10xf32> to vector<8x1xf32>
    %13 = arith.fptosi %12 : vector<8x1xf32> to vector<8x1xi32>
    %c7_i32 = arith.constant 7 : i32
    %14 = vector.broadcast %c7_i32 : i32 to vector<8x1xi32>
    %15 = arith.addi %13, %14 : vector<8x1xi32>
    %16 = vector.broadcast %15 : vector<8x1xi32> to vector<8x24xi32>
    %17 = arith.cmpi eq, %1, %16 : vector<8x24xi32>
    %18 = arith.extui %17 : vector<8x24xi1> to vector<8x24xi32>
    %19 = arith.sitofp %18 : vector<8x24xi32> to vector<8x24xf32>
    %20 = arith.addf %11, %19 : vector<8x24xf32>
    %21 = vector.extract_strided_slice %0 {offsets = [0, 2], sizes = [8, 1], strides = [1, 1]} : vector<8x10xf32> to vector<8x1xf32>
    %22 = arith.fptosi %21 : vector<8x1xf32> to vector<8x1xi32>
    %c18_i32 = arith.constant 18 : i32
    %23 = vector.broadcast %c18_i32 : i32 to vector<8x1xi32>
    %24 = arith.addi %22, %23 : vector<8x1xi32>
    %25 = vector.broadcast %24 : vector<8x1xi32> to vector<8x24xi32>
    %26 = arith.cmpi eq, %1, %25 : vector<8x24xi32>
    %27 = arith.extui %26 : vector<8x24xi1> to vector<8x24xi32>
    %28 = arith.sitofp %27 : vector<8x24xi32> to vector<8x24xf32>
    %29 = arith.addf %20, %28 : vector<8x24xf32>
    %30 = vector.extract_strided_slice %0 {offsets = [0, 3], sizes = [8, 7], strides = [1, 1]} : vector<8x10xf32> to vector<8x7xf32>
    %c0_1 = arith.constant 0 : index
    %c0_2 = arith.constant 0 : index
    %31 = vector.load %arg2[%c0_1, %c0_2] : memref<24x32xf32, #tpu.memory_space<vmem>>, vector<24x32xf32>
    %cst_3 = arith.constant dense<0.000000e+00> : vector<8x32xf32>
    %32 = tpu.matmul %29, %31, %cst_3 {dimension_numbers = #tpu.dot_dimension_numbers<[1], [0], [0], [1], [0, 0, 1, 1], [], []>} : vector<8x24xf32>, vector<24x32xf32>, vector<8x32xf32> -> vector<8x32xf32>
    %c0_4 = arith.constant 0 : index
    %c0_5 = arith.constant 0 : index
    %33 = vector.load %arg3[%c0_4, %c0_5] : memref<7x32xf32, #tpu.memory_space<vmem>>, vector<7x32xf32>
    %cst_6 = arith.constant dense<0.000000e+00> : vector<8x32xf32>
    %34 = tpu.matmul %30, %33, %cst_6 {dimension_numbers = #tpu.dot_dimension_numbers<[1], [0], [0], [1], [0, 0, 1, 1], [], []>} : vector<8x7xf32>, vector<7x32xf32>, vector<8x32xf32> -> vector<8x32xf32>
    %35 = arith.addf %32, %34 : vector<8x32xf32>
    %c0_7 = arith.constant 0 : index
    %c0_8 = arith.constant 0 : index
    %36 = vector.load %arg4[%c0_7, %c0_8] : memref<1x32xf32, #tpu.memory_space<vmem>>, vector<1x32xf32>
    %37 = vector.broadcast %36 : vector<1x32xf32> to vector<8x32xf32>
    %38 = arith.addf %35, %37 : vector<8x32xf32>
    %cst_9 = arith.constant 0.000000e+00 : f32
    %39 = vector.broadcast %cst_9 : f32 to vector<8x32xf32>
    %40 = arith.maximumf %38, %39 : vector<8x32xf32>
    %c0_10 = arith.constant 0 : index
    %c0_11 = arith.constant 0 : index
    %41 = vector.load %arg5[%c0_10, %c0_11] : memref<32x32xf32, #tpu.memory_space<vmem>>, vector<32x32xf32>
    %c0_12 = arith.constant 0 : index
    %c0_13 = arith.constant 0 : index
    %42 = vector.load %arg6[%c0_12, %c0_13] : memref<1x32xf32, #tpu.memory_space<vmem>>, vector<1x32xf32>
    %cst_14 = arith.constant dense<0.000000e+00> : vector<8x32xf32>
    %43 = tpu.matmul %40, %41, %cst_14 {dimension_numbers = #tpu.dot_dimension_numbers<[1], [0], [0], [1], [0, 0, 1, 1], [], []>} : vector<8x32xf32>, vector<32x32xf32>, vector<8x32xf32> -> vector<8x32xf32>
    %44 = vector.broadcast %42 : vector<1x32xf32> to vector<8x32xf32>
    %45 = arith.addf %43, %44 : vector<8x32xf32>
    %cst_15 = arith.constant 0.000000e+00 : f32
    %46 = vector.broadcast %cst_15 : f32 to vector<8x32xf32>
    %47 = arith.maximumf %45, %46 : vector<8x32xf32>
    %c0_16 = arith.constant 0 : index
    %c0_17 = arith.constant 0 : index
    %48 = vector.load %arg7[%c0_16, %c0_17] : memref<32x2xf32, #tpu.memory_space<vmem>>, vector<32x2xf32>
    %c0_18 = arith.constant 0 : index
    %c0_19 = arith.constant 0 : index
    %49 = vector.load %arg8[%c0_18, %c0_19] : memref<1x2xf32, #tpu.memory_space<vmem>>, vector<1x2xf32>
    %cst_20 = arith.constant dense<0.000000e+00> : vector<8x2xf32>
    %50 = tpu.matmul %47, %48, %cst_20 {dimension_numbers = #tpu.dot_dimension_numbers<[1], [0], [0], [1], [0, 0, 1, 1], [], []>} : vector<8x32xf32>, vector<32x2xf32>, vector<8x2xf32> -> vector<8x2xf32>
    %51 = vector.broadcast %49 : vector<1x2xf32> to vector<8x2xf32>
    %52 = arith.addf %50, %51 : vector<8x2xf32>
    %53 = vector.extract_strided_slice %52 {offsets = [0, 1], sizes = [8, 1], strides = [1, 1]} : vector<8x2xf32> to vector<8x1xf32>
    %54 = vector.extract_strided_slice %52 {offsets = [0, 0], sizes = [8, 1], strides = [1, 1]} : vector<8x2xf32> to vector<8x1xf32>
    %55 = arith.subf %53, %54 : vector<8x1xf32>
    %56 = math.absf %55 : vector<8x1xf32>
    %cst_21 = arith.constant 0.000000e+00 : f32
    %57 = vector.broadcast %cst_21 : f32 to vector<8x1xf32>
    %58 = arith.subf %57, %56 : vector<8x1xf32>
    %59 = math.exp %58 : vector<8x1xf32>
    %cst_22 = arith.constant 1.000000e+00 : f32
    %60 = vector.broadcast %cst_22 : f32 to vector<8x1xf32>
    %61 = arith.addf %60, %59 : vector<8x1xf32>
    %62 = math.log %61 : vector<8x1xf32>
    %cst_23 = arith.constant 0.000000e+00 : f32
    %63 = vector.broadcast %cst_23 : f32 to vector<8x1xf32>
    %64 = arith.maximumf %55, %63 : vector<8x1xf32>
    %65 = arith.addf %64, %62 : vector<8x1xf32>
    %cst_24 = arith.constant 0.000000e+00 : f32
    %66 = vector.broadcast %cst_24 : f32 to vector<8x1xf32>
    %67 = arith.subf %66, %65 : vector<8x1xf32>
    %cst_25 = arith.constant 0.000000e+00 : f32
    %68 = vector.broadcast %cst_25 : f32 to vector<8x1xf32>
    %69 = arith.subf %68, %55 : vector<8x1xf32>
    %cst_26 = arith.constant 0.000000e+00 : f32
    %70 = vector.broadcast %cst_26 : f32 to vector<8x1xf32>
    %71 = arith.maximumf %69, %70 : vector<8x1xf32>
    %72 = arith.addf %71, %62 : vector<8x1xf32>
    %cst_27 = arith.constant 0.000000e+00 : f32
    %73 = vector.broadcast %cst_27 : f32 to vector<8x1xf32>
    %74 = arith.subf %73, %72 : vector<8x1xf32>
    %75 = tpu.concatenate %67, %74 in 1 : vector<8x1xf32>, vector<8x1xf32> -> vector<8x2xf32>
    %c0_28 = arith.constant 0 : index
    %c0_29 = arith.constant 0 : index
    %76 = vector.load %arg9[%c0_28, %c0_29] : memref<8x2xf32, #tpu.memory_space<vmem>>, vector<8x2xf32>
    tpu.vector_store %arg9[%c0_28, %c0_29], %75 {strides = array<i32>} : memref<8x2xf32, #tpu.memory_space<vmem>>, vector<8x2xf32>,
    return
  }
  func.func @transform_0(%arg0: i32) -> (i32, i32) {
    %c0_i32 = arith.constant 0 : i32
    %c0_i32_0 = arith.constant 0 : i32
    return %arg0, %c0_i32 : i32, i32
  }
  func.func @transform_1(%arg0: i32) -> (i32, i32) {
    %c0_i32 = arith.constant 0 : i32
    %c0_i32_0 = arith.constant 0 : i32
    %c0_i32_1 = arith.constant 0 : i32
    return %c0_i32, %c0_i32_0 : i32, i32
  }
  func.func @transform_2(%arg0: i32) -> (i32, i32) {
    %c0_i32 = arith.constant 0 : i32
    %c0_i32_0 = arith.constant 0 : i32
    %c0_i32_1 = arith.constant 0 : i32
    return %c0_i32, %c0_i32_0 : i32, i32
  }
  func.func @transform_3(%arg0: i32) -> (i32, i32) {
    %c0_i32 = arith.constant 0 : i32
    %c0_i32_0 = arith.constant 0 : i32
    %c0_i32_1 = arith.constant 0 : i32
    return %c0_i32, %c0_i32_0 : i32, i32
  }
  func.func @transform_4(%arg0: i32) -> (i32, i32) {
    %c0_i32 = arith.constant 0 : i32
    %c0_i32_0 = arith.constant 0 : i32
    %c0_i32_1 = arith.constant 0 : i32
    return %c0_i32, %c0_i32_0 : i32, i32
  }
  func.func @transform_5(%arg0: i32) -> (i32, i32) {
    %c0_i32 = arith.constant 0 : i32
    %c0_i32_0 = arith.constant 0 : i32
    %c0_i32_1 = arith.constant 0 : i32
    return %c0_i32, %c0_i32_0 : i32, i32
  }
  func.func @transform_6(%arg0: i32) -> (i32, i32) {
    %c0_i32 = arith.constant 0 : i32
    %c0_i32_0 = arith.constant 0 : i32
    %c0_i32_1 = arith.constant 0 : i32
    return %c0_i32, %c0_i32_0 : i32, i32
  }
  func.func @transform_7(%arg0: i32) -> (i32, i32) {
    %c0_i32 = arith.constant 0 : i32
    %c0_i32_0 = arith.constant 0 : i32
    %c0_i32_1 = arith.constant 0 : i32
    return %c0_i32, %c0_i32_0 : i32, i32
  }
  func.func @transform_8(%arg0: i32) -> (i32, i32) {
    %c0_i32 = arith.constant 0 : i32
    %c0_i32_0 = arith.constant 0 : i32
    return %arg0, %c0_i32 : i32, i32
  }
}

</mosaic_0001>

<llo_original>
// kernel: _predictor_forward.1
$region0: #{_predictor_forward.1}
  #allocation0 [shape = 'u32[]', space=smem, size = 0x4, offset = 0x4, fixed_abs, tag = 'smem constant byte address 0x4 - core index']
  #allocation1 [shape = 'u32[144,128]{1,0:T(1,128)}', space=vmem, size = 0x12000, scoped, tag = 'internal scratch']
  %s0 = inlined_call_operand.vmem [shape: f32[8,10], index: 0, kind: input, shape index: {}]
  %s1 = inlined_call_operand.hbm [shape: f32[24,32], index: 1, kind: input, shape index: {}]
  %s2 = inlined_call_operand.hbm [shape: f32[7,32], index: 2, kind: input, shape index: {}]
  %s3 = inlined_call_operand.vmem [shape: f32[1,32], index: 3, kind: input, shape index: {}]
  %s4 = inlined_call_operand.vmem [shape: f32[32,32], index: 4, kind: input, shape index: {}]
  %s5 = inlined_call_operand.hbm [shape: f32[1,32], index: 5, kind: input, shape index: {}]
  %s6 = inlined_call_operand.vmem [shape: f32[32,2], index: 6, kind: input, shape index: {}]
  %s7 = inlined_call_operand.vmem [shape: f32[1,2], index: 7, kind: input, shape index: {}]
  %s8 = inlined_call_operand.vmem [shape: f32[8,2], index: 8, kind: output, shape index: {}]
  %s9 = sld [smem:[#allocation0]]
  $region54: #{_predictor_forward.1} parent=0
    _
  %s11 = ssub.s32 1, %s9
  %s12 = scalar_select 0, %s11, %s9
  $region1: #{_predictor_forward.1} parent=0
    #allocation2 [shape = 'u8[12288]{0}', space=vmem, size = 0x3000, scoped, tag = 'input window, operand 1, single buffered']
    #allocation3 [shape = 's32[1]{0}', space=sflag, size = 0x4, scoped, tag = 'scoped memory for _predictor_forward.1']
    #allocation4 [shape = 'u8[4096]{0}', space=vmem, size = 0x1000, scoped, tag = 'input window, operand 2, single buffered']
    #allocation5 [shape = 's32[1]{0}', space=sflag, size = 0x4, scoped, tag = 'scoped memory for _predictor_forward.1']
    #allocation6 [shape = 'u8[512]{0}', space=vmem, size = 0x400, scoped, tag = 'input window, operand 5, single buffered']
    %13 = vsyncpa [#allocation3], 0
    %14 = vsyncpa [#allocation5], 0
    // Predicated region
    $region2: #{_predictor_forward.1} parent=1 // pred_check
      _
    $region3: #{_predictor_forward.1} parent=1 // pred_check_branch
      %16 = sbr.rel (0) target = $region5
    $region4: #{_predictor_forward.1} parent=1 // pred_region
      _
    $region5: #{_predictor_forward.1} parent=1 // pred_fallthru
      _
    // Predicated region
    $region6: #{_predictor_forward.1} parent=1 // pred_check
      _
    $region7: #{_predictor_forward.1} parent=1 // pred_check_branch
      %18 = sbr.rel (0) target = $region9
    $region8: #{_predictor_forward.1} parent=1 // pred_region
      %s20 = ssub.s32 384, 384
      %21 = vsyncadd [#allocation3], %s20
      %s22 = sshll.u32 [#allocation2], 4
      %s23 = int_to_ptr.vmem [resolvable:$true] %s22
      %28 = dma.hbm_to_vmem [thread:$0]  %s1, 384, %s23, [#allocation3], 128, 128, 8
    $region9: #{_predictor_forward.1} parent=1 // pred_fallthru
      _
    // Predicated region
    $region10: #{_predictor_forward.1} parent=1 // pred_check
      _
    $region11: #{_predictor_forward.1} parent=1 // pred_check_branch
      %30 = sbr.rel (0) target = $region13
    $region12: #{_predictor_forward.1} parent=1 // pred_region
      %s32 = ssub.s32 128, 128
      %33 = vsyncadd [#allocation5], %s32
      %s35 = sshll.u32 [#allocation4], 4
      %s36 = int_to_ptr.vmem [resolvable:$true] %s35
      %38 = dma.hbm_to_vmem [thread:$0]  %s2, 128, %s36, [#allocation5]
    $region13: #{_predictor_forward.1} parent=1 // pred_fallthru
      _
    // Predicated region
    $region14: #{_predictor_forward.1} parent=1 // pred_check
      _
    $region15: #{_predictor_forward.1} parent=1 // pred_check_branch
      %40 = sbr.rel (0) target = $region17
    $region16: #{_predictor_forward.1} parent=1 // pred_region
      _
    $region17: #{_predictor_forward.1} parent=1 // pred_fallthru
      _
    // Predicated region
    $region18: #{_predictor_forward.1} parent=1 // pred_check
      _
    $region19: #{_predictor_forward.1} parent=1 // pred_check_branch
      %42 = sbr.rel (0) target = $region21
    $region20: #{_predictor_forward.1} parent=1 // pred_region
      _
    $region21: #{_predictor_forward.1} parent=1 // pred_fallthru
      _
    // Predicated region
    $region22: #{_predictor_forward.1} parent=1 // pred_check
      _
    $region23: #{_predictor_forward.1} parent=1 // pred_check_branch
      %44 = sbr.rel (0) target = $region25
    $region24: #{_predictor_forward.1} parent=1 // pred_region
      %s46 = ssub.s32 16, 16
      %47 = vsyncadd [#allocation5], %s46
      %s49 = sshll.u32 [#allocation6], 4
      %s50 = int_to_ptr.vmem [resolvable:$true] %s49
      %52 = dma.hbm_to_vmem [thread:$0]  %s5, 16, %s50, [#allocation5]
    $region25: #{_predictor_forward.1} parent=1 // pred_fallthru
      _
    // Predicated region
    $region26: #{_predictor_forward.1} parent=1 // pred_check
      _
    $region27: #{_predictor_forward.1} parent=1 // pred_check_branch
      %54 = sbr.rel (0) target = $region29
    $region28: #{_predictor_forward.1} parent=1 // pred_region
      _
    $region29: #{_predictor_forward.1} parent=1 // pred_fallthru
      _
    // Predicated region
    $region30: #{_predictor_forward.1} parent=1 // pred_check
      _
    $region31: #{_predictor_forward.1} parent=1 // pred_check_branch
      %56 = sbr.rel (0) target = $region33
    $region32: #{_predictor_forward.1} parent=1 // pred_region
      _
    $region33: #{_predictor_forward.1} parent=1 // pred_fallthru
      _
    // Predicated region
    $region34: #{_predictor_forward.1} parent=1 // pred_check
      _
    $region35: #{_predictor_forward.1} parent=1 // pred_check_branch
      %58 = sbr.rel (0) target = $region37
    $region36: #{_predictor_forward.1} parent=1 // pred_region
      %59 = dma.done [#allocation3], 384
    $region37: #{_predictor_forward.1} parent=1 // pred_fallthru
      _
    // Predicated region
    $region38: #{_predictor_forward.1} parent=1 // pred_check
      _
    $region39: #{_predictor_forward.1} parent=1 // pred_check_branch
      %61 = sbr.rel (0) target = $region41
    $region40: #{_predictor_forward.1} parent=1 // pred_region
      %62 = dma.done [#allocation5], 128
    $region41: #{_predictor_forward.1} parent=1 // pred_fallthru
      _
    // Predicated region
    $region42: #{_predictor_forward.1} parent=1 // pred_check
      _
    $region43: #{_predictor_forward.1} parent=1 // pred_check_branch
      %64 = sbr.rel (0) target = $region45
    $region44: #{_predictor_forward.1} parent=1 // pred_region
      %65 = dma.done [#allocation5], 16
    $region45: #{_predictor_forward.1} parent=1 // pred_fallthru
      _
    %v66 = vld [vmem:[%s0] sm:$0xff]
    %v67 = vlaneseq
    %v68 = vand.u32 %v67, 127
    %v69 = vcvt.f32.s32.to.zero.pseudo %v66
    %70 = vset.pattern.permute.xlu0 0
    %71 = vperm.xlu0 %70, %v69
    %v72 = vpop.permute.xlu0 %71
    %vm73 = vcmp.eq.s32.totalorder %v68, %v72
    %v74 = vsel %vm73, 1, 0
    %v75 = vcvt.s32.f32 %v74
    %v76 = vadd.f32 %v75, 0.0
    %v77 = vadd.s32 %v69, 7
    %78 = vset.pattern.permute.xlu0 1
    %79 = vperm.xlu0 %78, %v77
    %v80 = vpop.permute.xlu0 %79
    %vm81 = vcmp.eq.s32.totalorder %v68, %v80
    %v82 = vsel %vm81, 1, 0
    %v83 = vcvt.s32.f32 %v82
    %v84 = vadd.f32 %v76, %v83
    %v85 = vadd.s32 %v69, 18
    %86 = vset.pattern.permute.xlu0 2
    %87 = vperm.xlu0 %86, %v85
    %v88 = vpop.permute.xlu0 %87
    %vm89 = vcmp.eq.s32.totalorder %v68, %v88
    %v90 = vsel %vm89, 1, 0
    %v91 = vcvt.s32.f32 %v90
    %v92 = vadd.f32 %v84, %v91
    %v93 = vld [vmem:[#allocation2] sm:$0xff]
    %v94 = vld [vmem:[#allocation2 + $0x8] sm:$0xff]
    %v95 = vld [vmem:[#allocation2 + $0x10] sm:$0xff]
    %v96 = vld [vmem:[#allocation4] sm:$0x7f]
    %98 = vrot.lane.b32.xlu0 %v66, 125
    %v99 = vpop.permute.xlu0 %98
    %vm100 = vcmask 56320
    %v101 = vsel %vm100, %v99, 0
    %vm103 = vcmask 1046528
    %v105 = vsel %vm103, %v96, 0
    %107 = vmatprep.subr.mxu0 0.0
    %108 = vmatpush1.msra.mxu0 0.0
    %109 = vmatprep.subr.mxu0 0.0
    %110 = vmatpush1.msra.mxu0 0.0
    %111 = vmatprep.subr.mxu0 0.0
    %112 = vmatpush1.msra.mxu0 0.0
    %113 = vmatprep.subr.mxu0 0.0
    %114 = vmatpush1.msra.mxu0 0.0
    %115 = vmatprep.subr.mxu0 0.0
    %116 = vmatpush1.msra.mxu0 0.0
    %117 = vmatprep.subr.mxu0 0.0
    %118 = vmatpush1.msra.mxu0 0.0
    %119 = vmatprep.subr.mxu0 0.0
    %120 = vmatpush1.msra.mxu0 0.0
    %121 = vmatprep.subr.mxu0 0.0
    %122 = vmatpush1.msra.mxu0 0.0
    %123 = vmatprep.subr.mxu0 0.0
    %124 = vmatpush1.msra.mxu0 0.0
    %125 = vmatprep.subr.mxu0 0.0
    %126 = vmatpush1.msra.mxu0 0.0
    %127 = vmatprep.subr.mxu0 0.0
    %128 = vmatpush1.msra.mxu0 0.0
    %129 = vmatprep.subr.mxu0 0.0
    %130 = vmatpush1.msra.mxu0 0.0
    %131 = vmatprep.subr.mxu0 0.0
    %132 = vmatpush1.msra.mxu0 0.0
    %133 = vmatprep.subr.mxu0 0.0
    %134 = vmatpush1.msra.mxu0 0.0
    %135 = vmatprep.subr.mxu0 0.0
    %136 = vmatpush1.msra.mxu0 0.0
    %137 = vmatprep.subr.mxu0 0.0
    %138 = vmatpush1.msra.mxu0 %v105
    %139 = vmatprep.subr.mxu0 0.0
    %140 = vmatpush2.msra.mxu0 0.0
    %141 = vmatprep.subr.mxu0 0.0
    %142 = vmatpush2.msra.mxu0 0.0
    %143 = vmatprep.subr.mxu0 0.0
    %144 = vmatpush2.msra.mxu0 0.0
    %145 = vmatprep.subr.mxu0 0.0
    %146 = vmatpush2.msra.mxu0 0.0
    %147 = vmatprep.subr.mxu0 0.0
    %148 = vmatpush2.msra.mxu0 0.0
    %149 = vmatprep.subr.mxu0 0.0
    %150 = vmatpush2.msra.mxu0 0.0
    %151 = vmatprep.subr.mxu0 0.0
    %152 = vmatpush2.msra.mxu0 0.0
    %153 = vmatprep.subr.mxu0 0.0
    %154 = vmatpush2.msra.mxu0 0.0
    %155 = vmatprep.subr.mxu0 0.0
    %156 = vmatpush2.msra.mxu0 0.0
    %157 = vmatprep.subr.mxu0 0.0
    %158 = vmatpush2.msra.mxu0 0.0
    %159 = vmatprep.subr.mxu0 0.0
    %160 = vmatpush2.msra.mxu0 0.0
    %161 = vmatprep.subr.mxu0 0.0
    %162 = vmatpush2.msra.mxu0 0.0
    %163 = vmatprep.subr.mxu0 0.0
    %164 = vmatpush2.msra.mxu0 0.0
    %165 = vmatprep.subr.mxu0 0.0
    %166 = vmatpush2.msra.mxu0 0.0
    %167 = vmatprep.subr.mxu0 0.0
    %168 = vmatpush2.msra.mxu0 0.0
    %169 = vmatprep.subr.mxu0 0.0
    %170 = vmatpush2.msra.mxu0 0.0
    %171 = vmatprep.mubr.f32.mxu0 0.0
    %172 = vmatmul.mubr.f32.gmra.mxu0 %v101
    %v173 = vpop.f32.mrf.mxu0
    %v174 = vadd.f32 0.0, %v173
    %v175 = vpop.f32.mrf.mxu0
    %176 = vdwg.mxu0
    %vm177 = vcmask 195584
    %v179 = vsel %vm177, %v92, 0
    %181 = vmatprep.subr.mxu0 0.0
    %182 = vmatpush1.msra.mxu0 0.0
    %183 = vmatprep.subr.mxu0 0.0
    %184 = vmatpush1.msra.mxu0 0.0
    %185 = vmatprep.subr.mxu0 0.0
    %186 = vmatpush1.msra.mxu0 0.0
    %187 = vmatprep.subr.mxu0 0.0
    %188 = vmatpush1.msra.mxu0 0.0
    %189 = vmatprep.subr.mxu0 0.0
    %190 = vmatpush1.msra.mxu0 0.0
    %191 = vmatprep.subr.mxu0 0.0
    %192 = vmatpush1.msra.mxu0 0.0
    %193 = vmatprep.subr.mxu0 0.0
    %194 = vmatpush1.msra.mxu0 0.0
    %195 = vmatprep.subr.mxu0 0.0
    %196 = vmatpush1.msra.mxu0 0.0
    %197 = vmatprep.subr.mxu0 0.0
    %198 = vmatpush1.msra.mxu0 0.0
    %199 = vmatprep.subr.mxu0 0.0
    %200 = vmatpush1.msra.mxu0 0.0
    %201 = vmatprep.subr.mxu0 0.0
    %202 = vmatpush1.msra.mxu0 0.0
    %203 = vmatprep.subr.mxu0 0.0
    %204 = vmatpush1.msra.mxu0 0.0
    %205 = vmatprep.subr.mxu0 0.0
    %206 = vmatpush1.msra.mxu0 0.0
    %207 = vmatprep.subr.mxu0 0.0
    %208 = vmatpush1.msra.mxu0 %v95
    %209 = vmatprep.subr.mxu0 0.0
    %210 = vmatpush1.msra.mxu0 %v94
    %211 = vmatprep.subr.mxu0 0.0
    %212 = vmatpush1.msra.mxu0 %v93
    %213 = vmatprep.subr.mxu0 0.0
    %214 = vmatpush2.msra.mxu0 0.0
    %215 = vmatprep.subr.mxu0 0.0
    %216 = vmatpush2.msra.mxu0 0.0
    %217 = vmatprep.subr.mxu0 0.0
    %218 = vmatpush2.msra.mxu0 0.0
    %219 = vmatprep.subr.mxu0 0.0
    %220 = vmatpush2.msra.mxu0 0.0
    %221 = vmatprep.subr.mxu0 0.0
    %222 = vmatpush2.msra.mxu0 0.0
    %223 = vmatprep.subr.mxu0 0.0
    %224 = vmatpush2.msra.mxu0 0.0
    %225 = vmatprep.subr.mxu0 0.0
    %226 = vmatpush2.msra.mxu0 0.0
    %227 = vmatprep.subr.mxu0 0.0
    %228 = vmatpush2.msra.mxu0 0.0
    %229 = vmatprep.subr.mxu0 0.0
    %230 = vmatpush2.msra.mxu0 0.0
    %231 = vmatprep.subr.mxu0 0.0
    %232 = vmatpush2.msra.mxu0 0.0
    %233 = vmatprep.subr.mxu0 0.0
    %234 = vmatpush2.msra.mxu0 0.0
    %235 = vmatprep.subr.mxu0 0.0
    %236 = vmatpush2.msra.mxu0 0.0
    %237 = vmatprep.subr.mxu0 0.0
    %238 = vmatpush2.msra.mxu0 0.0
    %239 = vmatprep.subr.mxu0 0.0
    %240 = vmatpush2.msra.mxu0 0.0
    %241 = vmatprep.subr.mxu0 0.0
    %242 = vmatpush2.msra.mxu0 0.0
    %243 = vmatprep.subr.mxu0 0.0
    %244 = vmatpush2.msra.mxu0 0.0
    %245 = vmatprep.mubr.f32.mxu0 0.0
    %246 = vmatmul.mubr.f32.gmra.mxu0 %v179
    %v247 = vpop.f32.mrf.mxu0
    %v248 = vadd.f32 %v174, %v247
    %v249 = vpop.f32.mrf.mxu0
    %250 = vdwg.mxu0
    %v251 = vld [vmem:[%s3] sm:$0x1]
    %v253 = vlaneseq
    %v254 = vshrl.u32 %v253, 7
    %v255 = vsub.s32 0, %v254
    %v256 = vrot.slane %v251, %v255
    %v258 = vadd.f32 %v248, %v256
    %v259 = vmax.f32 %v258, 0.0
    %v260 = vld [vmem:[%s4] sm:$0xff]
    %v261 = vld [vmem:[%s4 + $0x8] sm:$0xff]
    %v262 = vld [vmem:[%s4 + $0x10] sm:$0xff]
    %v263 = vld [vmem:[%s4 + $0x18] sm:$0xff]
    %v264 = vld [vmem:[#allocation6] sm:$0x1]
    %v266 = vlaneseq
    %v267 = vshrl.u32 %v266, 7
    %v268 = vsub.s32 0, %v267
    %v269 = vrot.slane %v264, %v268
    %vm271 = vcmask 261120
    %v273 = vsel %vm271, %v259, 0
    %275 = vmatprep.subr.mxu0 0.0
    %276 = vmatpush1.msra.mxu0 0.0
    %277 = vmatprep.subr.mxu0 0.0
    %278 = vmatpush1.msra.mxu0 0.0
    %279 = vmatprep.subr.mxu0 0.0
    %280 = vmatpush1.msra.mxu0 0.0
    %281 = vmatprep.subr.mxu0 0.0
    %282 = vmatpush1.msra.mxu0 0.0
    %283 = vmatprep.subr.mxu0 0.0
    %284 = vmatpush1.msra.mxu0 0.0
    %285 = vmatprep.subr.mxu0 0.0
    %286 = vmatpush1.msra.mxu0 0.0
    %287 = vmatprep.subr.mxu0 0.0
    %288 = vmatpush1.msra.mxu0 0.0
    %289 = vmatprep.subr.mxu0 0.0
    %290 = vmatpush1.msra.mxu0 0.0
    %291 = vmatprep.subr.mxu0 0.0
    %292 = vmatpush1.msra.mxu0 0.0
    %293 = vmatprep.subr.mxu0 0.0
    %294 = vmatpush1.msra.mxu0 0.0
    %295 = vmatprep.subr.mxu0 0.0
    %296 = vmatpush1.msra.mxu0 0.0
    %297 = vmatprep.subr.mxu0 0.0
    %298 = vmatpush1.msra.mxu0 0.0
    %299 = vmatprep.subr.mxu0 0.0
    %300 = vmatpush1.msra.mxu0 %v263
    %301 = vmatprep.subr.mxu0 0.0
    %302 = vmatpush1.msra.mxu0 %v262
    %303 = vmatprep.subr.mxu0 0.0
    %304 = vmatpush1.msra.mxu0 %v261
    %305 = vmatprep.subr.mxu0 0.0
    %306 = vmatpush1.msra.mxu0 %v260
    %307 = vmatprep.subr.mxu0 0.0
    %308 = vmatpush2.msra.mxu0 0.0
    %309 = vmatprep.subr.mxu0 0.0
    %310 = vmatpush2.msra.mxu0 0.0
    %311 = vmatprep.subr.mxu0 0.0
    %312 = vmatpush2.msra.mxu0 0.0
    %313 = vmatprep.subr.mxu0 0.0
    %314 = vmatpush2.msra.mxu0 0.0
    %315 = vmatprep.subr.mxu0 0.0
    %316 = vmatpush2.msra.mxu0 0.0
    %317 = vmatprep.subr.mxu0 0.0
    %318 = vmatpush2.msra.mxu0 0.0
    %319 = vmatprep.subr.mxu0 0.0
    %320 = vmatpush2.msra.mxu0 0.0
    %321 = vmatprep.subr.mxu0 0.0
    %322 = vmatpush2.msra.mxu0 0.0
    %323 = vmatprep.subr.mxu0 0.0
    %324 = vmatpush2.msra.mxu0 0.0
    %325 = vmatprep.subr.mxu0 0.0
    %326 = vmatpush2.msra.mxu0 0.0
    %327 = vmatprep.subr.mxu0 0.0
    %328 = vmatpush2.msra.mxu0 0.0
    %329 = vmatprep.subr.mxu0 0.0
    %330 = vmatpush2.msra.mxu0 0.0
    %331 = vmatprep.subr.mxu0 0.0
    %332 = vmatpush2.msra.mxu0 0.0
    %333 = vmatprep.subr.mxu0 0.0
    %334 = vmatpush2.msra.mxu0 0.0
    %335 = vmatprep.subr.mxu0 0.0
    %336 = vmatpush2.msra.mxu0 0.0
    %337 = vmatprep.subr.mxu0 0.0
    %338 = vmatpush2.msra.mxu0 0.0
    %339 = vmatprep.mubr.f32.mxu0 0.0
    %340 = vmatmul.mubr.f32.gmra.mxu0 %v273
    %v341 = vpop.f32.mrf.mxu0
    %v342 = vadd.f32 %v269, %v341
    %v343 = vpop.f32.mrf.mxu0
    %344 = vdwg.mxu0
    %v345 = vmax.f32 %v342, 0.0
    %v346 = vld [vmem:[%s6] sm:$0xff]
    %v347 = vld [vmem:[%s6 + $0x8] sm:$0xff]
    %v348 = vld [vmem:[%s6 + $0x10] sm:$0xff]
    %v349 = vld [vmem:[%s6 + $0x18] sm:$0xff]
    %v350 = vld [vmem:[%s7] sm:$0x1]
    %v352 = vlaneseq
    %v353 = vshrl.u32 %v352, 7
    %v354 = vsub.s32 0, %v353
    %v355 = vrot.slane %v350, %v354
    %v358 = vsel %vm271, %v345, 0
    %360 = vmatprep.subr.mxu0 0.0
    %361 = vmatpush1.msra.mxu0 0.0
    %362 = vmatprep.subr.mxu0 0.0
    %363 = vmatpush1.msra.mxu0 0.0
    %364 = vmatprep.subr.mxu0 0.0
    %365 = vmatpush1.msra.mxu0 0.0
    %366 = vmatprep.subr.mxu0 0.0
    %367 = vmatpush1.msra.mxu0 0.0
    %368 = vmatprep.subr.mxu0 0.0
    %369 = vmatpush1.msra.mxu0 0.0
    %370 = vmatprep.subr.mxu0 0.0
    %371 = vmatpush1.msra.mxu0 0.0
    %372 = vmatprep.subr.mxu0 0.0
    %373 = vmatpush1.msra.mxu0 0.0
    %374 = vmatprep.subr.mxu0 0.0
    %375 = vmatpush1.msra.mxu0 0.0
    %376 = vmatprep.subr.mxu0 0.0
    %377 = vmatpush1.msra.mxu0 0.0
    %378 = vmatprep.subr.mxu0 0.0
    %379 = vmatpush1.msra.mxu0 0.0
    %380 = vmatprep.subr.mxu0 0.0
    %381 = vmatpush1.msra.mxu0 0.0
    %382 = vmatprep.subr.mxu0 0.0
    %383 = vmatpush1.msra.mxu0 0.0
    %384 = vmatprep.subr.mxu0 0.0
    %385 = vmatpush1.msra.mxu0 %v349
    %386 = vmatprep.subr.mxu0 0.0
    %387 = vmatpush1.msra.mxu0 %v348
    %388 = vmatprep.subr.mxu0 0.0
    %389 = vmatpush1.msra.mxu0 %v347
    %390 = vmatprep.subr.mxu0 0.0
    %391 = vmatpush1.msra.mxu0 %v346
    %392 = vmatprep.subr.mxu0 0.0
    %393 = vmatpush2.msra.mxu0 0.0
    %394 = vmatprep.subr.mxu0 0.0
    %395 = vmatpush2.msra.mxu0 0.0
    %396 = vmatprep.subr.mxu0 0.0
    %397 = vmatpush2.msra.mxu0 0.0
    %398 = vmatprep.subr.mxu0 0.0
    %399 = vmatpush2.msra.mxu0 0.0
    %400 = vmatprep.subr.mxu0 0.0
    %401 = vmatpush2.msra.mxu0 0.0
    %402 = vmatprep.subr.mxu0 0.0
    %403 = vmatpush2.msra.mxu0 0.0
    %404 = vmatprep.subr.mxu0 0.0
    %405 = vmatpush2.msra.mxu0 0.0
    %406 = vmatprep.subr.mxu0 0.0
    %407 = vmatpush2.msra.mxu0 0.0
    %408 = vmatprep.subr.mxu0 0.0
    %409 = vmatpush2.msra.mxu0 0.0
    %410 = vmatprep.subr.mxu0 0.0
    %411 = vmatpush2.msra.mxu0 0.0
    %412 = vmatprep.subr.mxu0 0.0
    %413 = vmatpush2.msra.mxu0 0.0
    %414 = vmatprep.subr.mxu0 0.0
    %415 = vmatpush2.msra.mxu0 0.0
    %416 = vmatprep.subr.mxu0 0.0
    %417 = vmatpush2.msra.mxu0 0.0
    %418 = vmatprep.subr.mxu0 0.0
    %419 = vmatpush2.msra.mxu0 0.0
    %420 = vmatprep.subr.mxu0 0.0
    %421 = vmatpush2.msra.mxu0 0.0
    %422 = vmatprep.subr.mxu0 0.0
    %423 = vmatpush2.msra.mxu0 0.0
    %424 = vmatprep.mubr.f32.mxu0 0.0
    %425 = vmatmul.mubr.f32.gmra.mxu0 %v358
    %v426 = vpop.f32.mrf.mxu0
    %v427 = vadd.f32 %v355, %v426
    %v428 = vpop.f32.mrf.mxu0
    %429 = vdwg.mxu0
    %431 = vrot.lane.b32.xlu0 %v427, 1
    %v432 = vpop.permute.xlu0 %431
    %v434 = vsub.f32 %v427, %v432
    %v435 = vand.u32 2147483647, %v434
    %v436 = vsub.f32 0.0, %v435
    %v437 = vmul.f32 %v436, 1.442695
    %v438 = vpow.pop %v437
    %v439 = vadd.f32 %v438, 1.0
    %v440 = vlog2.pop %v439
    %v441 = vmul.f32 %v440, 0.6931472
    %v442 = vmax.f32 %v434, 0.0
    %v443 = vadd.f32 %v442, %v441
    %v444 = vsub.f32 0.0, %v443
    %v445 = vsub.f32 0.0, %v434
    %v446 = vmax.f32 %v445, 0.0
    %v447 = vadd.f32 %v446, %v441
    %v448 = vsub.f32 0.0, %v447
    %450 = vrot.lane.b32.xlu0 %v444, 127
    %v451 = vpop.permute.xlu0 %450
    %vm453 = vcmask 7168
    %v454 = vsel %vm453, %v451, %v448
    %vm455 = vcmask 15360
    %456 = vst.msk [vmem:[%s8] sm:$0xff] %vm455, %v454
    // Predicated region
    $region46: #{_predictor_forward.1} parent=1 // pred_check
      _
    $region47: #{_predictor_forward.1} parent=1 // pred_check_branch
      %458 = sbr.rel (0) target = $region49
    $region48: #{_predictor_forward.1} parent=1 // pred_region
      _
    $region49: #{_predictor_forward.1} parent=1 // pred_fallthru
      _
    // Predicated region
    $region50: #{_predictor_forward.1} parent=1 // pred_check
      _
    $region51: #{_predictor_forward.1} parent=1 // pred_check_branch
      %460 = sbr.rel (0) target = $region53
    $region52: #{_predictor_forward.1} parent=1 // pred_region
      _
    $region53: #{_predictor_forward.1} parent=1 // pred_fallthru
      _
    %461 = vsyncpa [#allocation3], 1
    %462 = vsyncpa [#allocation5], 1

</llo_original>
